<compile_context>
chip_gen: v6e
topology: v6e:2x2x1
jax: 0.10.0
libtpu: 0.0.40
codegen_flags: <defaults>
</compile_context>

<pallas_src>
import jax
import jax.numpy as jnp
from jax.experimental import pallas as pl
from jax.experimental.pallas import tpu as pltpu

LANES = 128
SUBLANES = 8
ALIGN = SUBLANES * LANES          # 1024-element alignment for a clean 2D slab
TARGET_TILE_BYTES = 2 * 1024 * 1024   # ~2 MiB per tile (VMEM-safe on v5e/v6e/v7x)


def _srelu_kernel(params_ref, x_ref, o_ref):
    # params_ref (SMEM, f32): [threshold_l, threshold_r, alpha_r]
    x = x_ref[...]
    dt = x.dtype
    tl = params_ref[0].astype(dt)
    tr = params_ref[1].astype(dt)
    ar = params_ref[2].astype(dt)
    # Clamp form: equivalent to the nested where for tl <= tr (module default),
    # ~5 VPU ops/element instead of ~8 and half the live vregs.
    c = jnp.minimum(jnp.maximum(x, tl), tr)
    o_ref[...] = c + ar * (x - c)


def srelu_pallas(x, threshold_l, threshold_r, alpha_l, alpha_r):
    """Elementwise SReLU over an arbitrary-shaped tensor using a Pallas TPU kernel."""
    del alpha_l  # unused in the reference forward (alpha_r applied to both branches)
    orig_shape = x.shape
    dtype = x.dtype
    itemsize = jnp.dtype(dtype).itemsize

    # ---- flatten; pad only if the element count is not (8*128)-aligned ----
    flat = x.reshape(-1)
    n = flat.shape[0]
    padded = ((n + ALIGN - 1) // ALIGN) * ALIGN
    needs_pad = padded != n
    if needs_pad:
        # TODO(synk): rare misaligned case costs an extra HBM pass for pad+slice;
        # aligned activations (typical NCHW sizes) skip this entirely.
        flat = jnp.pad(flat, (0, padded - n))

    # ---- choose a lane-wide column count C (largest multiple of 128 dividing padded) ----
    C = LANES
    for cand in (4096, 2048, 1024, 512, 256, 128):
        if padded % cand == 0:
            C = cand
            break
    rows = padded // C
    x2d = flat.reshape(rows, C)

    # ---- block size: ~TARGET_TILE_BYTES per tile, rows rounded to a multiple of 8 ----
    target_elems = max(ALIGN, TARGET_TILE_BYTES // itemsize)
    max_block_rows = max(8, ((target_elems // C) // 8) * 8)
    block_rows = rows if rows <= max_block_rows else max_block_rows
    grid = (pl.cdiv(rows, block_rows),)

    tile_bytes = block_rows * C * itemsize
    # 2 double-buffered copies of (input tile + output tile) + headroom.
    vmem_limit = min(max(4 * tile_bytes + (4 << 20), 16 << 20), 32 << 20)

    # ---- packed scalar params (f32, SMEM): [tl, tr, ar] ----
    f32 = jnp.float32
    tl = jnp.asarray(threshold_l, f32).reshape(-1)[0]
    tr = jnp.asarray(threshold_r, f32).reshape(-1)[0]
    ar = jnp.asarray(alpha_r, f32).reshape(-1)[0]
    params = jnp.stack([tl, tr, ar])

    out2d = pl.pallas_call(
        _srelu_kernel,
        out_shape=jax.ShapeDtypeStruct((rows, C), dtype),
        grid=grid,
        in_specs=[
            pl.BlockSpec(memory_space=pltpu.SMEM),           # packed scalars
            pl.BlockSpec((block_rows, C), lambda i: (i, 0)),  # x tile
        ],
        out_specs=pl.BlockSpec((block_rows, C), lambda i: (i, 0)),
        compiler_params=pltpu.CompilerParams(
            dimension_semantics=("parallel",),
            vmem_limit_bytes=vmem_limit,
        ),
    )(params, x2d)

    out = out2d.reshape(-1)
    if needs_pad:
        out = out[:n]
    return out.reshape(orig_shape)


def srelu_ref(x, threshold_l, threshold_r, alpha_l, alpha_r):
    """Pure-JAX reference mirroring the PyTorch forward exactly."""
    del alpha_l
    return jnp.where(
        x > threshold_r,
        threshold_r + alpha_r * (x - threshold_r),
        jnp.where(x < threshold_l, threshold_l + alpha_r * (x - threshold_l), x),
    )


if __name__ == "__main__":
    # SReLU.__init__ defaults: normalized_shape=(1,), threshold=6.1, alpha=0.2
    threshold = 6.0 + 0.1
    alpha = 0.2
    threshold_l = jnp.full((1,), -threshold, dtype=jnp.float32)
    threshold_r = jnp.full((1,), +threshold, dtype=jnp.float32)
    alpha_l = jnp.full((1,), alpha, dtype=jnp.float32)
    alpha_r = jnp.full((1,), alpha, dtype=jnp.float32)

    key = jax.random.PRNGKey(0)
    # Small NCHW input; scaled so values cross both thresholds.
    x = 10.0 * jax.random.normal(key, (2, 4, 16, 16), dtype=jnp.float32)

    out = srelu_pallas(x, threshold_l, threshold_r, alpha_l, alpha_r)
    out = jax.block_until_ready(out)

    ref = srelu_ref(x, threshold_l[0], threshold_r[0], alpha_l[0], alpha_r[0])
    assert out.shape == x.shape and out.dtype == x.dtype
    assert jnp.allclose(out, ref, atol=1e-6, rtol=1e-6)

    print("KERNEL_OK")
</pallas_src>

<mosaic_0001>
module attributes {stable_mosaic.version = 11 : i64} {
  func.func @_srelu_kernel(%arg0: i32, %arg1: memref<3xf32, #tpu.memory_space<smem>>, %arg2: memref<1x2048xf32, #tpu.memory_space<vmem>>, %arg3: memref<1x2048xf32, #tpu.memory_space<vmem>>) attributes {dimension_semantics = [#tpu.dimension_semantics<parallel>], iteration_bounds = array<i64: 1>, scalar_prefetch = 0 : i64, scratch_operands = 0 : i64, tpu.core_type = #tpu.core_type<tc>, window_params = [{transform_indices = @transform_0, window_bounds = array<i64: 3>}, {transform_indices = @transform_1, window_bounds = array<i64: 1, 2048>}, {transform_indices = @transform_2, window_bounds = array<i64: 1, 2048>}]} {
    %c0 = arith.constant 0 : index
    %c0_0 = arith.constant 0 : index
    %0 = vector.load %arg2[%c0, %c0_0] : memref<1x2048xf32, #tpu.memory_space<vmem>>, vector<1x2048xf32>
    %c0_1 = arith.constant 0 : index
    %1 = memref.load %arg1[%c0_1] : memref<3xf32, #tpu.memory_space<smem>>
    %c1 = arith.constant 1 : index
    %2 = memref.load %arg1[%c1] : memref<3xf32, #tpu.memory_space<smem>>
    %c2 = arith.constant 2 : index
    %3 = memref.load %arg1[%c2] : memref<3xf32, #tpu.memory_space<smem>>
    %4 = vector.broadcast %1 : f32 to vector<1x2048xf32>
    %5 = arith.maximumf %0, %4 : vector<1x2048xf32>
    %6 = vector.broadcast %2 : f32 to vector<1x2048xf32>
    %7 = arith.minimumf %5, %6 : vector<1x2048xf32>
    %8 = arith.subf %0, %7 : vector<1x2048xf32>
    %9 = vector.broadcast %3 : f32 to vector<1x2048xf32>
    %10 = arith.mulf %9, %8 : vector<1x2048xf32>
    %11 = arith.addf %7, %10 : vector<1x2048xf32>
    %c0_2 = arith.constant 0 : index
    %c0_3 = arith.constant 0 : index
    %12 = vector.load %arg3[%c0_2, %c0_3] : memref<1x2048xf32, #tpu.memory_space<vmem>>, vector<1x2048xf32>
    tpu.vector_store %arg3[%c0_2, %c0_3], %11 {strides = array<i32>} : memref<1x2048xf32, #tpu.memory_space<vmem>>, vector<1x2048xf32>,
    return
  }
  func.func @transform_0(%arg0: i32) -> i32 {
    %c0_i32 = arith.constant 0 : i32
    %c0_i32_0 = arith.constant 0 : i32
    return %c0_i32 : i32
  }
  func.func @transform_1(%arg0: i32) -> (i32, i32) {
    %c0_i32 = arith.constant 0 : i32
    %c0_i32_0 = arith.constant 0 : i32
    return %arg0, %c0_i32 : i32, i32
  }
  func.func @transform_2(%arg0: i32) -> (i32, i32) {
    %c0_i32 = arith.constant 0 : i32
    %c0_i32_0 = arith.constant 0 : i32
    return %arg0, %c0_i32 : i32, i32
  }
}

</mosaic_0001>

<llo_original>
// kernel: tpu_custom_call.1
$region0: #{tpu_custom_call.1}
  #allocation0 [shape = 'u32[]', space=smem, size = 0x4, offset = 0x4, fixed_abs, tag = 'smem constant byte address 0x4 - core index']
  #allocation1 [shape = 'u32[144,128]{1,0:T(1,128)}', space=vmem, size = 0x12000, scoped, tag = 'internal scratch']
  %s0 = inlined_call_operand.hbm [shape: f32[3], index: 0, kind: input, shape index: {}]
  %s1 = inlined_call_operand.hbm [shape: f32[1,2048], index: 1, kind: input, shape index: {}]
  %s2 = inlined_call_operand.hbm [shape: f32[1,2048], index: 2, kind: output, shape index: {}]
  %s3 = sld [smem:[#allocation0]]
  $region26: #{tpu_custom_call.1} parent=0
    _
  %s5 = ssub.s32 1, %s3
  %s6 = scalar_select 0, %s5, %s3
  $region1: #{tpu_custom_call.1} parent=0
    #allocation2 [shape = 'u8[512]{0}', space=smem, size = 0x200, scoped, tag = 'input window, operand 0, single buffered']
    #allocation3 [shape = 's32[1]{0}', space=sflag, size = 0x4, scoped, tag = 'scoped memory for tpu_custom_call.1']
    #allocation4 [shape = 's32[1]{0}', space=sflag, size = 0x4, scoped, tag = 'scoped memory for tpu_custom_call.1']
    #allocation5 [shape = 's32[1]{0}', space=sflag, size = 0x4, scoped, tag = 'scoped memory for tpu_custom_call.1']
    #allocation6 [shape = 'u8[8192]{0}', space=vmem, size = 0x2000, scoped, tag = 'input window, operand 1, single buffered']
    #allocation7 [shape = 'u8[8192]{0}', space=vmem, size = 0x2000, scoped, tag = 'output window, operand 0, single buffered']
    %7 = vsyncpa [#allocation5], 0
    %8 = vsyncpa [#allocation3], 0
    %9 = vsyncpa [#allocation4], 0
    // Predicated region
    $region2: #{tpu_custom_call.1} parent=1 // pred_check
      _
    $region3: #{tpu_custom_call.1} parent=1 // pred_check_branch
      %11 = sbr.rel (0) target = $region5
    $region4: #{tpu_custom_call.1} parent=1 // pred_region
      %s13 = ssub.s32 16, 16
      %14 = vsyncadd [#allocation5], %s13
      %17 = dma.hbm_to_smem %s0, 16, [#allocation2], [#allocation5]
    $region5: #{tpu_custom_call.1} parent=1 // pred_fallthru
      _
    // Predicated region
    $region6: #{tpu_custom_call.1} parent=1 // pred_check
      _
    $region7: #{tpu_custom_call.1} parent=1 // pred_check_branch
      %19 = sbr.rel (0) target = $region9
    $region8: #{tpu_custom_call.1} parent=1 // pred_region
      %s21 = ssub.s32 256, 256
      %22 = vsyncadd [#allocation3], %s21
      %s24 = sshll.u32 [#allocation6], 4
      %s25 = int_to_ptr.vmem [resolvable:$true] %s24
      %27 = dma.hbm_to_vmem [thread:$0]  %s1, 256, %s25, [#allocation3]
    $region9: #{tpu_custom_call.1} parent=1 // pred_fallthru
      _
    // Predicated region
    $region10: #{tpu_custom_call.1} parent=1 // pred_check
      _
    $region11: #{tpu_custom_call.1} parent=1 // pred_check_branch
      %29 = sbr.rel (0) target = $region13
    $region12: #{tpu_custom_call.1} parent=1 // pred_region
      %30 = dma.done [#allocation5], 16
    $region13: #{tpu_custom_call.1} parent=1 // pred_fallthru
      _
    // Predicated region
    $region14: #{tpu_custom_call.1} parent=1 // pred_check
      _
    $region15: #{tpu_custom_call.1} parent=1 // pred_check_branch
      %32 = sbr.rel (0) target = $region17
    $region16: #{tpu_custom_call.1} parent=1 // pred_region
      %33 = dma.done [#allocation3], 256
    $region17: #{tpu_custom_call.1} parent=1 // pred_fallthru
      _
    %34 = sfence
    %v35 = vld [vmem:[#allocation6] sm:$0xff]
    %v36 = vld [vmem:[#allocation6 + $0x8] sm:$0xff]
    %s37 = sld [smem:[#allocation2]]
    %s38 = sld [smem:[#allocation2 + $0x1]]
    %s39 = sld [smem:[#allocation2 + $0x2]]
    %v40 = vstv %s37
    %v41 = vmax.f32 %v35, %v40
    %v42 = vmax.f32 %v36, %v40
    %v43 = vstv %s38
    %v44 = vmin.f32 %v41, %v43
    %v45 = vmin.f32 %v42, %v43
    %v46 = vsub.f32 %v35, %v44
    %v47 = vsub.f32 %v36, %v45
    %v48 = vstv %s39
    %v49 = vmul.f32 %v48, %v46
    %v50 = vmul.f32 %v48, %v47
    %v51 = vadd.f32 %v44, %v49
    %v52 = vadd.f32 %v45, %v50
    %53 = vst [vmem:[#allocation7] sm:$0xff] %v51
    %54 = vst [vmem:[#allocation7 + $0x8] sm:$0xff] %v52
    // Predicated region
    $region18: #{tpu_custom_call.1} parent=1 // pred_check
      _
    $region19: #{tpu_custom_call.1} parent=1 // pred_check_branch
      %56 = sbr.rel (0) target = $region21
    $region20: #{tpu_custom_call.1} parent=1 // pred_region
      %s58 = ssub.s32 256, 256
      %59 = vsyncadd [#allocation4], %s58
      %s61 = sshll.u32 [#allocation7], 4
      %s62 = int_to_ptr.vmem [resolvable:$true] %s61
      %64 = dma.vmem_to_hbm [thread:$0]  %s62, 256, %s2, [#allocation4]
    $region21: #{tpu_custom_call.1} parent=1 // pred_fallthru
      _
    // Predicated region
    $region22: #{tpu_custom_call.1} parent=1 // pred_check
      _
    $region23: #{tpu_custom_call.1} parent=1 // pred_check_branch
      %66 = sbr.rel (0) target = $region25
    $region24: #{tpu_custom_call.1} parent=1 // pred_region
      %67 = dma.done [#allocation4], 256
    $region25: #{tpu_custom_call.1} parent=1 // pred_fallthru
      _
    %68 = vsyncpa [#allocation3], 1
    %69 = vsyncpa [#allocation4], 1
    %70 = vsyncpa [#allocation5], 1

</llo_original>
